<compile_context>
chip_gen: v6e
topology: v6e:2x2x1
jax: 0.10.0
libtpu: 0.0.40
codegen_flags: <defaults>
</compile_context>

<pallas_src>
import functools

import jax
import jax.numpy as jnp
from jax import lax
from jax.experimental import pallas as pl
from jax.experimental.pallas import tpu as pltpu


_TARGET_TILE_F32_BYTES = 2 * 1024 * 1024   # ~2 MiB of f32 working set per tile


def _pick_h_tile(h: int, w: int) -> int:
    """Largest multiple-of-8 divisor of `h` whose f32 tile is ~<= 2 MiB."""
    if h % 8 != 0:
        return h                       # single full-height tile (block == full dim)
    target_rows = max(8, _TARGET_TILE_F32_BYTES // (w * 4))
    th = max(8, min(h, (target_rows // 8) * 8))
    while h % th != 0:
        th -= 8
    return th


def _grad_diffusion_tile_kernel(x_ref, o_ref, *, penalty, scale_h, scale_w):
    """One (TH, W) tile -> one (8, 128) lane-dense partial-sum block."""
    th, w = x_ref.shape
    x = x_ref[...].astype(jnp.float32)                         # (TH, W) f32

    if penalty == "l1":
        pen = jnp.abs
    elif penalty == "l2":
        pen = lambda d: d * d
    else:
        raise ValueError(f"Unsupported norm: {penalty}")

    aligned = (th % 8 == 0) and (w % 128 == 0)

    if aligned:
        # ---- fast path: roll + mask, tile-aligned shapes, VPU-only reduce ----
        # Probe the rotate direction once (one vreg per probe, negligible) so
        # the wrapped row/column is masked correctly whether pltpu.roll(x, n-1)
        # wraps at index n-1 (jnp.roll convention) or at index 0.  Either way
        # the unmasked entries cover exactly the forward differences at rows
        # 0..TH-2 / cols 0..W-2 of this tile.
        lane_probe = pltpu.roll(
            lax.broadcasted_iota(jnp.float32, (8, 128), 1), 127, 1)
        sub_probe = pltpu.roll(
            lax.broadcasted_iota(jnp.float32, (8, 128), 0), 7, 0)
        lane_fwd = lane_probe[0:1, 0:1] < 64.0                 # (1, 1) bool
        sub_fwd = sub_probe[0:1, 0:1] < 4.0                    # (1, 1) bool
        inv_row = jnp.where(sub_fwd, th - 1, 0)                # wrapped row index
        inv_col = jnp.where(lane_fwd, w - 1, 0)                # wrapped col index

        nxt_h = pltpu.roll(x, th - 1, 0)                       # row-shifted copy
        nxt_w = pltpu.roll(x, w - 1, 1)                        # lane-shifted copy
        ph = pen(nxt_h - x)                                    # (TH, W)
        pw = pen(nxt_w - x)                                    # (TH, W)

        row = lax.broadcasted_iota(jnp.int32, (th, 1), 0)
        col = lax.broadcasted_iota(jnp.int32, (1, w), 1)
        wh = jnp.where(row == inv_row, jnp.float32(0.0), jnp.float32(scale_h))
        ww = jnp.where(col == inv_col, jnp.float32(0.0), jnp.float32(scale_w))
        contrib = ph * wh + pw * ww                            # (TH, W)

        # Tile-aligned VPU adds down to a single (8, 128) vreg; the cross-lane /
        # cross-sublane reduce is deferred to the wrapper's jnp.sum.
        acc = contrib[0:8, :]
        for i in range(1, th // 8):
            acc = acc + contrib[i * 8:(i + 1) * 8, :]          # (8, W)
        part = acc[:, 0:128]
        for j in range(1, w // 128):
            part = part + acc[:, j * 128:(j + 1) * 128]        # (8, 128)
        o_ref[...] = part
    else:
        # ---- general path (small / non-aligned tiles): sliced differences ----
        dh = x[1:, :] - x[:-1, :]                              # (TH-1, W)
        dw = x[:, 1:] - x[:, :-1]                              # (TH, W-1)
        partial = (jnp.sum(pen(dh)) * jnp.float32(scale_h)
                   + jnp.sum(pen(dw)) * jnp.float32(scale_w))
        rid = lax.broadcasted_iota(jnp.int32, (8, 128), 0)
        cid = lax.broadcasted_iota(jnp.int32, (8, 128), 1)
        o_ref[...] = jnp.where((rid == 0) & (cid == 0), partial,
                               jnp.float32(0.0))


def gradient_diffusion_loss(pred, penalty="l1", loss_weight=1.0, h_tile=None):
    """Pallas TPU implementation of GradientDiffusionLoss.forward (4-D BCHW)."""
    if penalty not in ("l1", "l2"):
        raise ValueError(
            f'Unsupported norm: {penalty}, available options are ["l1","l2"].')
    if pred.ndim != 4:
        # TODO(synk): 3-D (BCH) and 5-D (BCHWD) module variants are not
        # implemented here; only the 4-D BCHW case is handled.
        raise ValueError("This kernel implements the 4-D (BCHW) case only.")
    B, C, H, W = pred.shape
    n_spatial = pred.ndim - 2
    if C != n_spatial:
        raise ValueError(
            f"Number of vector components, {C}, does not match number of "
            f"spatial dimensions, {n_spatial}")
    for s in (H, W):
        if s <= 4:
            raise ValueError("All spatial dimensions must be > 4")

    N = B * C
    x3 = pred.reshape(N, H, W)          # free reshape; HBM dtype preserved

    TH = _pick_h_tile(H, W) if h_tile is None else int(h_tile)
    if H % TH != 0 or (TH != H and TH % 8 != 0):
        raise ValueError(f"h_tile={TH} must divide H={H} and be a multiple of 8")
    num_tiles = H // TH

    # Normalization so that summing all scaled per-element contributions yields
    #   (mean(pen(dH)) + mean(pen(dW))) * loss_weight / n_spatial
    scale_h = float(loss_weight) / (n_spatial * N * (H - 1) * W)
    scale_w = float(loss_weight) / (n_spatial * N * H * (W - 1))

    kernel = functools.partial(
        _grad_diffusion_tile_kernel,
        penalty=penalty, scale_h=scale_h, scale_w=scale_w)

    partials = pl.pallas_call(
        kernel,
        out_shape=jax.ShapeDtypeStruct((N, num_tiles, 8, 128), jnp.float32),
        grid_spec=pltpu.PrefetchScalarGridSpec(
            num_scalar_prefetch=0,
            grid=(N, num_tiles),
            in_specs=[
                # (TH, W) tile of one (n, h-tile) slab; leading dim squeezed.
                pl.BlockSpec((None, TH, W), lambda n, t: (n, t, 0)),
            ],
            # Per-grid-cell lane-dense (8, 128) partial-sum block.
            out_specs=pl.BlockSpec((None, None, 8, 128),
                                   lambda n, t: (n, t, 0, 0)),
        ),
        compiler_params=pltpu.CompilerParams(
            dimension_semantics=("parallel", "parallel"),
            vmem_limit_bytes=32 * 1024 * 1024,
        ),
    )(x3)

    loss = jnp.sum(partials)

    # dH seam rows between adjacent H tiles (each counted exactly once).
    if num_tiles > 1:
        lo = x3[:, TH - 1:H - 1:TH, :].astype(jnp.float32)   # last row of tile t
        hi = x3[:, TH:H:TH, :].astype(jnp.float32)           # first row of tile t+1
        seam = hi - lo
        seam = jnp.abs(seam) if penalty == "l1" else seam * seam
        loss = loss + jnp.sum(seam) * jnp.float32(scale_h)
    return loss


def _reference_loss(pred, penalty="l1", loss_weight=1.0):
    """Pure-JAX reference mirroring the PyTorch module (for verification)."""
    pred = pred.astype(jnp.float32)
    grads = [
        pred[:, :, 1:, :] - pred[:, :, :-1, :],
        pred[:, :, :, 1:] - pred[:, :, :, :-1],
    ]
    loss = jnp.float32(0.0)
    for g in grads:
        if penalty == "l1":
            loss = loss + jnp.mean(jnp.abs(g))
        else:
            loss = loss + jnp.mean(g * g)
    return loss * loss_weight / float(pred.ndim - 2)


if __name__ == "__main__":
    key = jax.random.PRNGKey(0)
    loss_weight = 1.5

    # (shape BCHW, dtype, h_tile) -- C must equal the number of spatial dims (2).
    cases = [
        ((2, 2, 16, 16), jnp.float32, None),    # single tile, general path
        ((2, 2, 32, 16), jnp.float32, 8),       # 4 H-tiles + seams, general path
        ((1, 2, 48, 256), jnp.float32, 16),     # aligned fast path (roll + VPU reduce) + seams
        ((2, 2, 16, 128), jnp.bfloat16, 8),     # bf16 HBM dtype, aligned fast path + seam
    ]

    ok = True
    for idx, (shape, dtype, h_tile) in enumerate(cases):
        key, sub = jax.random.split(key)
        pred = jax.random.normal(sub, shape, dtype=jnp.float32).astype(dtype)
        for penalty in ("l1", "l2"):
            got = jax.block_until_ready(
                gradient_diffusion_loss(pred, penalty=penalty,
                                        loss_weight=loss_weight, h_tile=h_tile))
            want = jax.block_until_ready(
                _reference_loss(pred, penalty=penalty, loss_weight=loss_weight))
            if not jnp.allclose(got, want, rtol=2e-5, atol=1e-6):
                ok = False
                print(f"MISMATCH case={idx} shape={shape} "
                      f"dtype={jnp.dtype(dtype).name} penalty={penalty}: "
                      f"got={got}, want={want}")

    if ok:
        print("KERNEL_OK")
</pallas_src>

<mosaic_0001>
module attributes {stable_mosaic.version = 11 : i64} {
  func.func @_grad_diffusion_tile_kernel(%arg0: i32, %arg1: i32, %arg2: memref<1x16x16xf32, #tpu.memory_space<vmem>>, %arg3: memref<1x1x8x128xf32, #tpu.memory_space<vmem>>) attributes {dimension_semantics = [#tpu.dimension_semantics<parallel>, #tpu.dimension_semantics<parallel>], iteration_bounds = array<i64: 4, 1>, scalar_prefetch = 0 : i64, scratch_operands = 0 : i64, tpu.core_type = #tpu.core_type<tc>, window_params = [{transform_indices = @transform_0, window_bounds = array<i64: 1, 16, 16>}, {transform_indices = @transform_1, window_bounds = array<i64: 1, 1, 8, 128>}]} {
    %c0 = arith.constant 0 : index
    %c0_0 = arith.constant 0 : index
    %c0_1 = arith.constant 0 : index
    %0 = vector.load %arg2[%c0, %c0_0, %c0_1] : memref<1x16x16xf32, #tpu.memory_space<vmem>>, vector<1x16x16xf32>
    %1 = vector.shape_cast %0 : vector<1x16x16xf32> to vector<16x16xf32>
    %2 = vector.extract_strided_slice %1 {offsets = [1, 0], sizes = [15, 16], strides = [1, 1]} : vector<16x16xf32> to vector<15x16xf32>
    %3 = vector.extract_strided_slice %1 {offsets = [0, 0], sizes = [15, 16], strides = [1, 1]} : vector<16x16xf32> to vector<15x16xf32>
    %4 = arith.subf %2, %3 : vector<15x16xf32>
    %5 = vector.extract_strided_slice %1 {offsets = [0, 1], sizes = [16, 15], strides = [1, 1]} : vector<16x16xf32> to vector<16x15xf32>
    %6 = vector.extract_strided_slice %1 {offsets = [0, 0], sizes = [16, 15], strides = [1, 1]} : vector<16x16xf32> to vector<16x15xf32>
    %7 = arith.subf %5, %6 : vector<16x15xf32>
    %8 = math.absf %4 : vector<15x16xf32>
    %9 = vector.shape_cast %8 : vector<15x16xf32> to vector<1x15x16xf32>
    %cst = arith.constant dense<0.000000e+00> : vector<1xf32>
    %10 = vector.multi_reduction <add>, %9, %cst [1, 2] : vector<1x15x16xf32> to vector<1xf32>
    %11 = vector.shape_cast %10 : vector<1xf32> to vector<1x1x1xf32>
    %12 = vector.extract %11[0, 0, 0] : f32 from vector<1x1x1xf32>
    %cst_2 = arith.constant 7.812500e-04 : f32
    %13 = arith.mulf %12, %cst_2 : f32
    %14 = math.absf %7 : vector<16x15xf32>
    %15 = vector.shape_cast %14 : vector<16x15xf32> to vector<1x16x15xf32>
    %cst_3 = arith.constant dense<0.000000e+00> : vector<1xf32>
    %16 = vector.multi_reduction <add>, %15, %cst_3 [1, 2] : vector<1x16x15xf32> to vector<1xf32>
    %17 = vector.shape_cast %16 : vector<1xf32> to vector<1x1x1xf32>
    %18 = vector.extract %17[0, 0, 0] : f32 from vector<1x1x1xf32>
    %cst_4 = arith.constant 7.812500e-04 : f32
    %19 = arith.mulf %18, %cst_4 : f32
    %20 = arith.addf %13, %19 : f32
    %21 = tpu.iota {dimensions = array<i32: 0>} : vector<8x128xi32>
    %22 = tpu.iota {dimensions = array<i32: 1>} : vector<8x128xi32>
    %c0_i32 = arith.constant 0 : i32
    %23 = vector.broadcast %c0_i32 : i32 to vector<8x128xi32>
    %24 = arith.cmpi eq, %21, %23 : vector<8x128xi32>
    %c0_i32_5 = arith.constant 0 : i32
    %25 = vector.broadcast %c0_i32_5 : i32 to vector<8x128xi32>
    %26 = arith.cmpi eq, %22, %25 : vector<8x128xi32>
    %27 = arith.andi %24, %26 : vector<8x128xi1>
    %cst_6 = arith.constant 0.000000e+00 : f32
    %28 = vector.broadcast %20 : f32 to vector<8x128xf32>
    %29 = vector.broadcast %cst_6 : f32 to vector<8x128xf32>
    %30 = arith.select %27, %28, %29 : vector<8x128xi1>, vector<8x128xf32>
    %c0_7 = arith.constant 0 : index
    %c0_8 = arith.constant 0 : index
    %c0_9 = arith.constant 0 : index
    %c0_10 = arith.constant 0 : index
    %31 = vector.load %arg3[%c0_7, %c0_8, %c0_9, %c0_10] : memref<1x1x8x128xf32, #tpu.memory_space<vmem>>, vector<1x1x8x128xf32>
    %32 = vector.shape_cast %31 : vector<1x1x8x128xf32> to vector<8x128xf32>
    %33 = vector.shape_cast %30 : vector<8x128xf32> to vector<1x1x8x128xf32>
    tpu.vector_store %arg3[%c0_7, %c0_8, %c0_9, %c0_10], %33 {strides = array<i32>} : memref<1x1x8x128xf32, #tpu.memory_space<vmem>>, vector<1x1x8x128xf32>,
    return
  }
  func.func @transform_0(%arg0: i32, %arg1: i32) -> (i32, i32, i32) {
    %c0_i32 = arith.constant 0 : i32
    %c0_i32_0 = arith.constant 0 : i32
    return %arg0, %arg1, %c0_i32 : i32, i32, i32
  }
  func.func @transform_1(%arg0: i32, %arg1: i32) -> (i32, i32, i32, i32) {
    %c0_i32 = arith.constant 0 : i32
    %c0_i32_0 = arith.constant 0 : i32
    %c0_i32_1 = arith.constant 0 : i32
    return %arg0, %arg1, %c0_i32, %c0_i32_0 : i32, i32, i32, i32
  }
}

</mosaic_0001>

<llo_original>
// kernel: tpu_custom_call.1
$region0: #{tpu_custom_call.1}
  #allocation0 [shape = 'u32[]', space=smem, size = 0x4, offset = 0x4, fixed_abs, tag = 'smem constant byte address 0x4 - core index']
  #allocation1 [shape = 'u32[144,128]{1,0:T(1,128)}', space=vmem, size = 0x12000, scoped, tag = 'internal scratch']
  %s0 = inlined_call_operand.hbm [shape: f32[4,16,16], index: 0, kind: input, shape index: {}]
  %s1 = inlined_call_operand.hbm [shape: f32[4,1,8,128], index: 1, kind: output, shape index: {}]
  %s2 = sld [smem:[#allocation0]]
  $region41: #{tpu_custom_call.1} parent=0
    _
  %s4 = ssub.s32 1, %s2
  %s5 = scalar_select 0, %s4, %s2
  $region1: #{tpu_custom_call.1} parent=0
    #allocation2 [shape = 'u8[16384]{0}', space=vmem, size = 0x4000, scoped, tag = 'input window, operand 0']
    #allocation3 [shape = 's32[2]{0}', space=sflag, size = 0x8, scoped, tag = 'scoped memory for tpu_custom_call.1']
    #allocation4 [shape = 's32[2]{0}', space=sflag, size = 0x8, scoped, tag = 'scoped memory for tpu_custom_call.1']
    #allocation5 [shape = 'u8[8192]{0}', space=vmem, size = 0x2000, scoped, tag = 'output window, operand 0']
    %6 = vsyncpa [#allocation3], 0
    %s7 = scalar_lea.sflag [#allocation3], 1
    %8 = vsyncpa %s7, 0
    %9 = vsyncpa [#allocation4], 0
    %s10 = scalar_lea.sflag [#allocation4], 1
    %11 = vsyncpa %s10, 0
    loop: start=0, step=1, limit=6
    $region2: #{tpu_custom_call.1} parent=1 // loop_pre_header
      _
    $region3: #{tpu_custom_call.1} parent=1 // loop_header
      %s13 = sphi 0, %s17
      %p14 = scmp.ge.s32.totalorder %s13, 6
      %s20 = sphi 0, %s32
      %s21 = sphi 0, %s28
      %s22 = sphi 0, %s20
      %s23 = sphi 0, %s21
      %s24 = sphi 0, %s22
      %s25 = sphi 0, %s23
      %s37 = sphi 0, %s39
      %s40 = sphi 0, %s37
      %s41 = sphi 0, %s40
      %s57 = sphi 0, %s41
      %s65 = sphi 0, %s67
      %s68 = sphi 0, %s65
      %s69 = sphi 0, %s68
      %s85 = sphi 0, %s69
    $region4: #{tpu_custom_call.1} parent=1 // loop_header_branch
      %16 = sbr.rel (%p14) target = $region8
    $region5: #{tpu_custom_call.1} parent=1 // loop_body
      %s18 = ssub.s32 %s13, 1
      %s19 = ssub.s32 %s13, 2
      %s26 = sadd.s32 1, %s21
      %p27 = scmp.ge.s32.totalorder %s26, 1
      %s28 = scalar_select %p27, 0, %s26
      %s29 = sadd.s32 1, %s20
      %s30 = scalar_select %p27, %s29, %s20
      %p31 = scmp.ge.s32.totalorder %s30, 4
      %s32 = scalar_select %p31, 0, %s30
      %s33 = ssub.s32 %s20, %s32
      %s34 = ssub.s32 %s21, %s28
      %s35 = sor.u32 %s33, %s34
      %p36 = scmp.eq.s32.totalorder %s35, 0
      %s38 = sadd.s32 %s37, 1
      %s39 = scalar_select %p36, %s37, %s38
      %p42 = pneg %p36
      %p43 = scmp.eq.s32.totalorder %s13, 3
      %p44 = por %p42, %p43
      %p45 = scmp.ne.s32.totalorder %s37, %s40
      %p46 = scmp.eq.s32.totalorder %s13, 0
      %p47 = por %p45, %p46
      %p48 = scmp.ne.s32.totalorder %s37, %s40
      %p49 = scmp.eq.s32.totalorder %s18, 3
      %p50 = por %p48, %p49
      %p51 = scmp.ne.s32.totalorder %s40, %s41
      %p52 = scmp.eq.s32.totalorder %s18, 0
      %p53 = por %p51, %p52
      %p54 = scmp.ne.s32.totalorder %s40, %s41
      %p55 = scmp.eq.s32.totalorder %s19, 3
      %p56 = por %p54, %p55
      %p58 = scmp.ne.s32.totalorder %s41, %s57
      %p59 = scmp.eq.s32.totalorder %s19, 0
      %p60 = por %p58, %p59
      %s61 = ssub.s32 %s20, %s32
      %s62 = ssub.s32 %s21, %s28
      %s63 = sor.u32 %s61, %s62
      %p64 = scmp.eq.s32.totalorder %s63, 0
      %s66 = sadd.s32 %s65, 1
      %s67 = scalar_select %p64, %s65, %s66
      %p70 = pneg %p64
      %p71 = scmp.eq.s32.totalorder %s13, 3
      %p72 = por %p70, %p71
      %p73 = scmp.ne.s32.totalorder %s65, %s68
      %p74 = scmp.eq.s32.totalorder %s13, 0
      %p75 = por %p73, %p74
      %p76 = scmp.ne.s32.totalorder %s65, %s68
      %p77 = scmp.eq.s32.totalorder %s18, 3
      %p78 = por %p76, %p77
      %p79 = scmp.ne.s32.totalorder %s68, %s69
      %p80 = scmp.eq.s32.totalorder %s18, 0
      %p81 = por %p79, %p80
      %p82 = scmp.ne.s32.totalorder %s68, %s69
      %p83 = scmp.eq.s32.totalorder %s19, 3
      %p84 = por %p82, %p83
      %p86 = scmp.ne.s32.totalorder %s69, %s85
      %p87 = scmp.eq.s32.totalorder %s19, 0
      %p88 = por %p86, %p87
      %p89 = scmp.le.s32.totalorder 1, %s13
      %p90 = scmp.lt.s32.totalorder %s13, 5
      %p91 = pnand %p89, %p90
      %p92 = pneg %p91
      // Predicated region
      $region9: #{tpu_custom_call.1} parent=5 // pred_check
        _
      $region10: #{tpu_custom_call.1} parent=5 // pred_check_branch
        %94 = sbr.rel (%p91) target = $region12
      $region11: #{tpu_custom_call.1} parent=5 // pred_region
        %s95 = ssub.s32 %s13, 1
      $region12: #{tpu_custom_call.1} parent=5 // pred_fallthru
        _
      %p96 = scmp.lt.s32.totalorder %s13, 4
      // Predicated region
      $region13: #{tpu_custom_call.1} parent=5 // pred_check
        %p97 = pneg %p96
      $region14: #{tpu_custom_call.1} parent=5 // pred_check_branch
        %99 = sbr.rel (%p97) target = $region16
      $region15: #{tpu_custom_call.1} parent=5 // pred_region
        // Predicated region
        $region17: #{tpu_custom_call.1} parent=15 // pred_check
          %p100 = pneg %p47
        $region18: #{tpu_custom_call.1} parent=15 // pred_check_branch
          %102 = sbr.rel (%p100) target = $region20
        $region19: #{tpu_custom_call.1} parent=15 // pred_region
          %s103 = sand.u32 %s37, 1
          %s104 = scalar_lea.sflag [#allocation3], %s103
          %s105 = sand.u32 %s37, 1
          %s106 = smul.addr %s105, 16
          %s107 = scalar_lea.vmem [#allocation2], %s106
          %s108 = smul.u32 2, %s21
          %s110 = ssub.s32 256, 256
          %111 = vsyncadd %s104, %s110
          %s112 = smul.addr %s20, 2
          %s113 = sadd.s32 %s108, %s112
          %s114 = smul.addr %s113, 128
          %s115 = scalar_lea.hbm %s0, %s114
          %s116 = sshll.u32 %s107, 4
          %s117 = int_to_ptr.vmem [resolvable:$true] %s116
          %122 = dma.hbm_to_vmem [thread:$0]  %s115, 256, %s117, %s104, 128, 128, 8
        $region20: #{tpu_custom_call.1} parent=15 // pred_fallthru
          _
      $region16: #{tpu_custom_call.1} parent=5 // pred_fallthru
        _
      %p123 = scmp.le.s32.totalorder 1, %s13
      %p124 = scmp.lt.s32.totalorder %s13, 5
      %p125 = pnand %p123, %p124
      %p126 = pneg %p125
      // Predicated region
      $region21: #{tpu_custom_call.1} parent=5 // pred_check
        _
      $region22: #{tpu_custom_call.1} parent=5 // pred_check_branch
        %128 = sbr.rel (%p125) target = $region24
      $region23: #{tpu_custom_call.1} parent=5 // pred_region
        %s129 = ssub.s32 %s13, 1
        %s130 = sand.u32 %s40, 1
        %s131 = scalar_lea.sflag [#allocation3], %s130
        %s132 = sand.u32 %s40, 1
        %s133 = smul.addr %s132, 16
        %s134 = scalar_lea.vmem [#allocation2], %s133
        // Predicated region
        $region25: #{tpu_custom_call.1} parent=23 // pred_check
          %p135 = pneg %p53
        $region26: #{tpu_custom_call.1} parent=23 // pred_check_branch
          %137 = sbr.rel (%p135) target = $region28
        $region27: #{tpu_custom_call.1} parent=23 // pred_region
          %138 = dma.done %s131, 256
        $region28: #{tpu_custom_call.1} parent=23 // pred_fallthru
          _
        %s139 = sand.u32 %s40, 1
        %s140 = scalar_lea.sflag [#allocation3], %s139
        %s141 = sand.u32 %s40, 1
        %s142 = smul.addr %s141, 16
        %s143 = scalar_lea.vmem [#allocation2], %s142
        %p144 = pneg %p53
        %p145 = pneg %p50
        %p146 = pneg %p81
        %p147 = pneg %p78
        %s148 = sand.u32 %s68, 1
        %s149 = scalar_lea.sflag [#allocation4], %s148
        %s150 = sand.u32 %s68, 1
        %s151 = smul.addr %s150, 8
        %s152 = scalar_lea.vmem [#allocation5], %s151
        %s153 = smul.u32 2, %s23
        %v154 = vld [vmem:[%s134] sm:$0xff]
        %v155 = vld [vmem:[%s134 + $0x8] sm:$0xff]
        %vm158 = vcmask 1040384
        %v159 = vrot.slane %v154, 7
        %v160 = vrot.slane %v155, 7
        %v161 = vsel %vm158, %v159, %v160
        %v164 = vsub.f32 %v154, %v159
        %v165 = vsub.f32 %v155, %v161
        %166 = vrot.lane.b32.xlu0 %v154, 1
        %v167 = vpop.permute.xlu0 %166
        %168 = vrot.lane.b32.xlu0 %v155, 1
        %v169 = vpop.permute.xlu0 %168
        %v172 = vsub.f32 %v154, %v167
        %v173 = vsub.f32 %v155, %v169
        %v174 = vand.u32 2147483647, %v164
        %v175 = vand.u32 2147483647, %v165
        %vm178 = vcmask 1046528
        %v179 = vrot.slane %v174, 1
        %v180 = vrot.slane %v175, 1
        %v181 = vsel %vm178, %v179, %v180
        %vm184 = vcmask 130048
        %v185 = vsel %vm184, %v181, 0.0
        %vm186 = vcmask 129024
        %v187 = vsel %vm186, %v180, 0.0
        %v188 = vadd.f32 %v185, %v187
        %189 = vadd.xlane.f32.xlu0 %v188
        %v190 = vpop.xlane.xlu0 %189
        %v191 = vrot.slane %v190, 4
        %v192 = vadd.f32 %v190, %v191
        %v193 = vrot.slane %v192, 2
        %v194 = vadd.f32 %v192, %v193
        %v195 = vrot.slane %v194, 1
        %v196 = vadd.f32 %v194, %v195
        %s197 = vtos %v196
        %s198 = smul.f32 %s197, 0.00078125
        %v199 = vand.u32 2147483647, %v172
        %v200 = vand.u32 2147483647, %v173
        %203 = vrot.lane.b32.xlu0 %v199, 127
        %v204 = vpop.permute.xlu0 %203
        %205 = vrot.lane.b32.xlu0 %v200, 127
        %v206 = vpop.permute.xlu0 %205
        %vm209 = vcmask 121856
        %v210 = vsel %vm209, %v204, 0.0
        %v211 = vsel %vm209, %v206, 0.0
        %v212 = vadd.f32 %v210, %v211
        %213 = vadd.xlane.f32.xlu0 %v212
        %v214 = vpop.xlane.xlu0 %213
        %v215 = vrot.slane %v214, 4
        %v216 = vadd.f32 %v214, %v215
        %v217 = vrot.slane %v216, 2
        %v218 = vadd.f32 %v216, %v217
        %v219 = vrot.slane %v218, 1
        %v220 = vadd.f32 %v218, %v219
        %s221 = vtos %v220
        %s222 = smul.f32 %s221, 0.00078125
        %s223 = sadd.f32 %s198, %s222
        %v224 = vlaneseq
        %v225 = vshrl.u32 %v224, 7
        %v226 = vlaneseq
        %v227 = vand.u32 %v226, 127
        %vm228 = vcmp.eq.s32.totalorder %v225, 0
        %vm229 = vcmp.eq.s32.totalorder %v227, 0
        %vm230 = vmand %vm228, %vm229
        %v231 = vstv %s223
        %v232 = vsel %vm230, %v231, 0.0
        %233 = vst [vmem:[%s152] sm:$0xff] %v232
        %s234 = sand.u32 %s68, 1
        %s235 = scalar_lea.sflag [#allocation4], %s234
        %s236 = sand.u32 %s68, 1
        %s237 = smul.addr %s236, 8
        %s238 = scalar_lea.vmem [#allocation5], %s237
        // Predicated region
        $region29: #{tpu_custom_call.1} parent=23 // pred_check
          %p239 = pneg %p78
        $region30: #{tpu_custom_call.1} parent=23 // pred_check_branch
          %241 = sbr.rel (%p239) target = $region32
        $region31: #{tpu_custom_call.1} parent=23 // pred_region
          %s243 = ssub.s32 128, 128
          %244 = vsyncadd %s235, %s243
          %s245 = sadd.s32 %s23, %s22
          %s246 = smul.addr %s245, 128
          %s247 = scalar_lea.hbm %s1, %s246
          %s249 = sshll.u32 %s238, 4
          %s250 = int_to_ptr.vmem [resolvable:$true] %s249
          %252 = dma.vmem_to_hbm [thread:$0]  %s250, 128, %s247, %s235
        $region32: #{tpu_custom_call.1} parent=23 // pred_fallthru
          _
      $region24: #{tpu_custom_call.1} parent=5 // pred_fallthru
        _
      %p253 = scmp.le.s32.totalorder 2, %s13
      // Predicated region
      $region33: #{tpu_custom_call.1} parent=5 // pred_check
        %p254 = pneg %p253
      $region34: #{tpu_custom_call.1} parent=5 // pred_check_branch
        %256 = sbr.rel (%p254) target = $region36
      $region35: #{tpu_custom_call.1} parent=5 // pred_region
        %s257 = ssub.s32 %s13, 2
        // Predicated region
        $region37: #{tpu_custom_call.1} parent=35 // pred_check
          %p258 = pneg %p84
        $region38: #{tpu_custom_call.1} parent=35 // pred_check_branch
          %260 = sbr.rel (%p258) target = $region40
        $region39: #{tpu_custom_call.1} parent=35 // pred_region
          %s261 = sand.u32 %s69, 1
          %s262 = scalar_lea.sflag [#allocation4], %s261
          %s263 = sand.u32 %s69, 1
          %s264 = smul.addr %s263, 8
          %s265 = scalar_lea.vmem [#allocation5], %s264
          %266 = dma.done %s262, 128
        $region40: #{tpu_custom_call.1} parent=35 // pred_fallthru
          _
      $region36: #{tpu_custom_call.1} parent=5 // pred_fallthru
        _
    $region6: #{tpu_custom_call.1} parent=1 // loop_footer
      %s17 = sadd.s32 1, %s13
    $region7: #{tpu_custom_call.1} parent=1 // loop_footer_branch
      %12 = sbr.rel target = $region3
    $region8: #{tpu_custom_call.1} parent=1 // loop_exit
      _
    %267 = vsyncpa [#allocation3], 1
    %s268 = scalar_lea.sflag [#allocation3], 1
    %269 = vsyncpa %s268, 1
    %270 = vsyncpa [#allocation4], 1
    %s271 = scalar_lea.sflag [#allocation4], 1
    %272 = vsyncpa %s271, 1

</llo_original>
